<compile_context>
chip_gen: v7x
topology: tpu7x:2x2x1
jax: 0.10.0
libtpu: 0.0.40
codegen_flags: <defaults>
</compile_context>

<pallas_src>
import functools
import math

import jax
import jax.numpy as jnp
from jax.experimental import pallas as pl
from jax.experimental.pallas import tpu as pltpu


# ---------------------------------------------------------------------------
# helpers
# ---------------------------------------------------------------------------
def _replicated_spec(shape):
    """Full-array block that is re-used by every grid step."""
    n = len(shape)
    return pl.BlockSpec(shape, lambda *_: (0,) * n)


def make_positional_encoding(seq_len, d_model):
    position = jnp.arange(seq_len, dtype=jnp.float32)[:, None]
    div_term = jnp.exp(
        jnp.arange(0, d_model, 2, dtype=jnp.float32) * (-math.log(10000.0) / d_model)
    )
    pe = jnp.zeros((seq_len, d_model), dtype=jnp.float32)
    pe = pe.at[:, 0::2].set(jnp.sin(position * div_term))
    pe = pe.at[:, 1::2].set(jnp.cos(position * div_term))
    return pe


# ---------------------------------------------------------------------------
# kernel 1: scaled embedding + absolute positional encoding
# ---------------------------------------------------------------------------
def _embed_kernel(tok_ref, emb_ref, pe_ref, o_ref, *, vocab, scale):
    tok = tok_ref[...]                                        # (1, S) int32
    seq = tok.shape[-1]
    iota_v = jax.lax.broadcasted_iota(jnp.int32, (vocab, seq), 0)
    onehot_t = (iota_v == tok).astype(jnp.float32)            # (V, S)
    # x[s, h] = sum_v onehot_t[v, s] * emb[v, h]
    x = jax.lax.dot_general(
        onehot_t,
        emb_ref[...].astype(jnp.float32),
        dimension_numbers=(((0,), (0,)), ((), ())),
        preferred_element_type=jnp.float32,
    )                                                         # (S, H)
    o_ref[...] = (x * scale + pe_ref[...].astype(jnp.float32)).astype(o_ref.dtype)


def embed_pos_encode(tokens, emb, pe):
    B, S = tokens.shape
    V, H = emb.shape
    scale = math.sqrt(H)
    tok3 = tokens.astype(jnp.int32).reshape(B, 1, S)
    kernel = functools.partial(_embed_kernel, vocab=V, scale=scale)
    return pl.pallas_call(
        kernel,
        out_shape=jax.ShapeDtypeStruct((B, S, H), emb.dtype),
        grid_spec=pltpu.PrefetchScalarGridSpec(
            num_scalar_prefetch=0,
            grid=(B,),
            in_specs=[
                pl.BlockSpec((None, 1, S), lambda b: (b, 0, 0)),  # tokens, per batch
                _replicated_spec((V, H)),                          # embedding table
                _replicated_spec((S, H)),                          # positional encoding
            ],
            out_specs=pl.BlockSpec((None, S, H), lambda b: (b, 0, 0)),
        ),
        compiler_params=pltpu.CompilerParams(dimension_semantics=("parallel",)),
    )(tok3, emb, pe)


# ---------------------------------------------------------------------------
# kernel 2: one pre-norm transformer encoder layer (per batch element)
# ---------------------------------------------------------------------------
def _encoder_layer_kernel(
    x_ref, ln1g_ref, ln1b_ref, wqkv_ref, bqkv_ref, wo_ref, bo_ref,
    ln2g_ref, ln2b_ref, w1_ref, b1_ref, w2_ref, b2_ref, o_ref,
    *, nhead, head_dim,
):
    x = x_ref[...].astype(jnp.float32)                        # (S, H)
    H = x.shape[-1]

    def _ln(v, g, b):
        m = jnp.mean(v, axis=-1, keepdims=True)
        c = v - m
        var = jnp.mean(c * c, axis=-1, keepdims=True)
        return c * jax.lax.rsqrt(var + 1e-5) * g + b

    def _nt_dot(a, w):  # a @ w.T  (PyTorch Linear layout), f32 accumulate
        return jax.lax.dot_general(
            a, w, dimension_numbers=(((1,), (1,)), ((), ())),
            preferred_element_type=jnp.float32,
        )

    # --- self-attention block (pre-norm) ---
    h = _ln(x, ln1g_ref[...], ln1b_ref[...])
    qkv = _nt_dot(h, wqkv_ref[...]) + bqkv_ref[...]           # (S, 3H)
    q = qkv[:, :H]
    k = qkv[:, H:2 * H]
    v = qkv[:, 2 * H:3 * H]

    inv_sqrt_d = 1.0 / math.sqrt(head_dim)
    attn_proj = jnp.zeros_like(x)
    for hh in range(nhead):
        lo = hh * head_dim
        hi = lo + head_dim
        qh, kh, vh = q[:, lo:hi], k[:, lo:hi], v[:, lo:hi]
        scores = _nt_dot(qh, kh) * inv_sqrt_d                 # (S, S)
        scores = scores - jnp.max(scores, axis=-1, keepdims=True)
        p = jnp.exp(scores)
        p = p / jnp.sum(p, axis=-1, keepdims=True)
        oh = jnp.dot(p, vh, preferred_element_type=jnp.float32)   # (S, hd)
        # accumulate this head's slice of the output projection (== concat @ Wo.T)
        attn_proj = attn_proj + _nt_dot(oh, wo_ref[:, lo:hi])
    x = x + attn_proj + bo_ref[...]

    # --- feed-forward block (pre-norm) ---
    h2 = _ln(x, ln2g_ref[...], ln2b_ref[...])
    f = _nt_dot(h2, w1_ref[...]) + b1_ref[...]
    f = jnp.maximum(f, 0.0)                                   # relu
    f = _nt_dot(f, w2_ref[...]) + b2_ref[...]
    o_ref[...] = (x + f).astype(o_ref.dtype)


def encoder_layer(x, lp, *, nhead):
    B, S, H = x.shape
    FF = lp["w1"].shape[0]
    head_dim = H // nhead
    kernel = functools.partial(_encoder_layer_kernel, nhead=nhead, head_dim=head_dim)
    in_specs = [
        pl.BlockSpec((None, S, H), lambda b: (b, 0, 0)),  # x
        _replicated_spec((1, H)),       # ln1 gamma
        _replicated_spec((1, H)),       # ln1 beta
        _replicated_spec((3 * H, H)),   # in_proj weight
        _replicated_spec((1, 3 * H)),   # in_proj bias
        _replicated_spec((H, H)),       # out_proj weight
        _replicated_spec((1, H)),       # out_proj bias
        _replicated_spec((1, H)),       # ln2 gamma
        _replicated_spec((1, H)),       # ln2 beta
        _replicated_spec((FF, H)),      # linear1 weight
        _replicated_spec((1, FF)),      # linear1 bias
        _replicated_spec((H, FF)),      # linear2 weight
        _replicated_spec((1, H)),       # linear2 bias
    ]
    return pl.pallas_call(
        kernel,
        out_shape=jax.ShapeDtypeStruct((B, S, H), x.dtype),
        grid_spec=pltpu.PrefetchScalarGridSpec(
            num_scalar_prefetch=0,
            grid=(B,),
            in_specs=in_specs,
            out_specs=pl.BlockSpec((None, S, H), lambda b: (b, 0, 0)),
        ),
        compiler_params=pltpu.CompilerParams(dimension_semantics=("parallel",)),
    )(
        x,
        lp["ln1_g"].reshape(1, H), lp["ln1_b"].reshape(1, H),
        lp["wqkv"], lp["bqkv"].reshape(1, 3 * H),
        lp["wo"], lp["bo"].reshape(1, H),
        lp["ln2_g"].reshape(1, H), lp["ln2_b"].reshape(1, H),
        lp["w1"], lp["b1"].reshape(1, FF),
        lp["w2"], lp["b2"].reshape(1, H),
    )


# ---------------------------------------------------------------------------
# kernel 3: global average pooling + prediction linear
# ---------------------------------------------------------------------------
def _pool_predict_kernel(x_ref, wp_ref, bp_ref, o_ref):
    x = x_ref[...].astype(jnp.float32)                        # (tb, S, H)
    pooled = jnp.mean(x, axis=1)                              # (tb, H)
    out = jax.lax.dot_general(
        pooled, wp_ref[...].astype(jnp.float32),
        dimension_numbers=(((1,), (1,)), ((), ())),
        preferred_element_type=jnp.float32,
    ) + bp_ref[...]
    o_ref[...] = out.astype(o_ref.dtype)


def pool_predict(x, wp, bp):
    B, S, H = x.shape
    T = wp.shape[0]
    tb = B if B <= 128 else 128
    return pl.pallas_call(
        _pool_predict_kernel,
        out_shape=jax.ShapeDtypeStruct((B, T), x.dtype),
        grid_spec=pltpu.PrefetchScalarGridSpec(
            num_scalar_prefetch=0,
            grid=(pl.cdiv(B, tb),),
            in_specs=[
                pl.BlockSpec((tb, S, H), lambda i: (i, 0, 0)),
                _replicated_spec((T, H)),
                _replicated_spec((1, T)),
            ],
            out_specs=pl.BlockSpec((tb, T), lambda i: (i, 0)),
        ),
        compiler_params=pltpu.CompilerParams(dimension_semantics=("parallel",)),
    )(x, wp, bp.reshape(1, T))


# ---------------------------------------------------------------------------
# full forward + pure-JAX reference
# ---------------------------------------------------------------------------
def attn_model_forward(tokens, params, *, nhead):
    x = embed_pos_encode(tokens, params["emb"], params["pe"])
    for lp in params["layers"]:
        x = encoder_layer(x, lp, nhead=nhead)
    return pool_predict(x, params["wp"], params["bp"])


def _layer_norm_ref(x, g, b, eps=1e-5):
    m = jnp.mean(x, axis=-1, keepdims=True)
    c = x - m
    v = jnp.mean(c * c, axis=-1, keepdims=True)
    return c / jnp.sqrt(v + eps) * g + b


def attn_model_reference(tokens, params, *, nhead):
    emb = params["emb"]
    V, H = emb.shape
    x = emb[tokens] * math.sqrt(H) + params["pe"][None, :, :]
    B, S, _ = x.shape
    hd = H // nhead
    for lp in params["layers"]:
        h = _layer_norm_ref(x, lp["ln1_g"], lp["ln1_b"])
        qkv = jnp.einsum("bsh,oh->bso", h, lp["wqkv"]) + lp["bqkv"]
        q, k, v = qkv[..., :H], qkv[..., H:2 * H], qkv[..., 2 * H:]
        q = q.reshape(B, S, nhead, hd)
        k = k.reshape(B, S, nhead, hd)
        v = v.reshape(B, S, nhead, hd)
        scores = jnp.einsum("bqnd,bknd->bnqk", q, k) / math.sqrt(hd)
        p = jax.nn.softmax(scores, axis=-1)
        o = jnp.einsum("bnqk,bknd->bqnd", p, v).reshape(B, S, H)
        x = x + jnp.einsum("bsh,oh->bso", o, lp["wo"]) + lp["bo"]
        h2 = _layer_norm_ref(x, lp["ln2_g"], lp["ln2_b"])
        f = jax.nn.relu(jnp.einsum("bsh,fh->bsf", h2, lp["w1"]) + lp["b1"])
        f = jnp.einsum("bsf,hf->bsh", f, lp["w2"]) + lp["b2"]
        x = x + f
    pooled = jnp.mean(x, axis=1)
    return jnp.einsum("bh,th->bt", pooled, params["wp"]) + params["bp"]


def init_params(key, *, vocab, seq_len, d_model, dim_ff, num_layers, num_tasks):
    keys = jax.random.split(key, 4 + num_layers)

    def nrm(k, shape, s=0.1):
        return s * jax.random.normal(k, shape, dtype=jnp.float32)

    params = {
        "emb": jax.random.uniform(keys[0], (vocab, d_model), jnp.float32, -0.1, 0.1),
        "pe": make_positional_encoding(seq_len, d_model),
        "wp": nrm(keys[1], (num_tasks, d_model)),
        "bp": nrm(keys[2], (num_tasks,), 0.02),
        "layers": [],
    }
    for li in range(num_layers):
        lk = jax.random.split(keys[4 + li], 12)
        params["layers"].append({
            "ln1_g": 1.0 + nrm(lk[0], (d_model,), 0.05),
            "ln1_b": nrm(lk[1], (d_model,), 0.05),
            "wqkv": nrm(lk[2], (3 * d_model, d_model)),
            "bqkv": nrm(lk[3], (3 * d_model,), 0.02),
            "wo": nrm(lk[4], (d_model, d_model)),
            "bo": nrm(lk[5], (d_model,), 0.02),
            "ln2_g": 1.0 + nrm(lk[6], (d_model,), 0.05),
            "ln2_b": nrm(lk[7], (d_model,), 0.05),
            "w1": nrm(lk[8], (dim_ff, d_model)),
            "b1": nrm(lk[9], (dim_ff,), 0.02),
            "w2": nrm(lk[10], (d_model, dim_ff)),
            "b2": nrm(lk[11], (d_model,), 0.02),
        })
    return params


if __name__ == "__main__":
    key = jax.random.PRNGKey(0)
    B, S, V = 2, 8, 21          # batch, aa_seq_len, num_tokens
    H, NHEAD, FF = 32, 2, 64    # embedding_len, num_heads, num_hidden
    NUM_LAYERS, NUM_TASKS = 2, 1

    k_tok, k_par = jax.random.split(key)
    tokens = jax.random.randint(k_tok, (B, S), 0, V, dtype=jnp.int32)
    params = init_params(k_par, vocab=V, seq_len=S, d_model=H, dim_ff=FF,
                         num_layers=NUM_LAYERS, num_tasks=NUM_TASKS)

    out = attn_model_forward(tokens, params, nhead=NHEAD)
    out = jax.block_until_ready(out)

    ref = attn_model_reference(tokens, params, nhead=NHEAD)
    assert out.shape == (B, NUM_TASKS)
    assert jnp.allclose(out, ref, atol=2e-3, rtol=2e-3), (
        f"mismatch vs reference: max abs diff {jnp.max(jnp.abs(out - ref))}"
    )

    print("KERNEL_OK")
</pallas_src>

<mosaic_0001>
module attributes {stable_mosaic.version = 11 : i64} {
  func.func @_embed_kernel(%arg0: i32, %arg1: memref<1x1x8xi32, #tpu.memory_space<vmem>>, %arg2: memref<21x32xf32, #tpu.memory_space<vmem>>, %arg3: memref<8x32xf32, #tpu.memory_space<vmem>>, %arg4: memref<1x8x32xf32, #tpu.memory_space<vmem>>) attributes {dimension_semantics = [#tpu.dimension_semantics<parallel>], iteration_bounds = array<i64: 2>, scalar_prefetch = 0 : i64, scratch_operands = 0 : i64, tpu.core_type = #tpu.core_type<tc>, window_params = [{transform_indices = @transform_0, window_bounds = array<i64: 1, 1, 8>}, {pipeline_mode = #tpu.pipeline_mode<synchronous>, transform_indices = @transform_1, window_bounds = array<i64: 21, 32>}, {pipeline_mode = #tpu.pipeline_mode<synchronous>, transform_indices = @transform_2, window_bounds = array<i64: 8, 32>}, {transform_indices = @transform_3, window_bounds = array<i64: 1, 8, 32>}]} {
    %c0 = arith.constant 0 : index
    %c0_0 = arith.constant 0 : index
    %c0_1 = arith.constant 0 : index
    %0 = vector.load %arg1[%c0, %c0_0, %c0_1] : memref<1x1x8xi32, #tpu.memory_space<vmem>>, vector<1x1x8xi32>
    %1 = vector.shape_cast %0 : vector<1x1x8xi32> to vector<1x8xi32>
    %2 = tpu.iota {dimensions = array<i32: 0>} : vector<21x8xi32>
    %3 = vector.broadcast %1 : vector<1x8xi32> to vector<21x8xi32>
    %4 = arith.cmpi eq, %2, %3 : vector<21x8xi32>
    %5 = arith.extui %4 : vector<21x8xi1> to vector<21x8xi32>
    %6 = arith.sitofp %5 : vector<21x8xi32> to vector<21x8xf32>
    %c0_2 = arith.constant 0 : index
    %c0_3 = arith.constant 0 : index
    %7 = vector.load %arg2[%c0_2, %c0_3] : memref<21x32xf32, #tpu.memory_space<vmem>>, vector<21x32xf32>
    %cst = arith.constant dense<0.000000e+00> : vector<8x32xf32>
    %8 = tpu.matmul %6, %7, %cst {dimension_numbers = #tpu.dot_dimension_numbers<[0], [0], [1], [1], [0, 1, 1, 1], [], []>} : vector<21x8xf32>, vector<21x32xf32>, vector<8x32xf32> -> vector<8x32xf32>
    %cst_4 = arith.constant 5.65685415 : f32
    %9 = vector.broadcast %cst_4 : f32 to vector<8x32xf32>
    %10 = arith.mulf %8, %9 : vector<8x32xf32>
    %c0_5 = arith.constant 0 : index
    %c0_6 = arith.constant 0 : index
    %11 = vector.load %arg3[%c0_5, %c0_6] : memref<8x32xf32, #tpu.memory_space<vmem>>, vector<8x32xf32>
    %12 = arith.addf %10, %11 : vector<8x32xf32>
    %c0_7 = arith.constant 0 : index
    %c0_8 = arith.constant 0 : index
    %c0_9 = arith.constant 0 : index
    %13 = vector.load %arg4[%c0_7, %c0_8, %c0_9] : memref<1x8x32xf32, #tpu.memory_space<vmem>>, vector<1x8x32xf32>
    %14 = vector.shape_cast %13 : vector<1x8x32xf32> to vector<8x32xf32>
    %15 = vector.shape_cast %12 : vector<8x32xf32> to vector<1x8x32xf32>
    tpu.vector_store %arg4[%c0_7, %c0_8, %c0_9], %15 {strides = array<i32>} : memref<1x8x32xf32, #tpu.memory_space<vmem>>, vector<1x8x32xf32>,
    return
  }
  func.func @transform_0(%arg0: i32) -> (i32, i32, i32) {
    %c0_i32 = arith.constant 0 : i32
    %c0_i32_0 = arith.constant 0 : i32
    %c0_i32_1 = arith.constant 0 : i32
    return %arg0, %c0_i32, %c0_i32_0 : i32, i32, i32
  }
  func.func @transform_1(%arg0: i32) -> (i32, i32) {
    %c0_i32 = arith.constant 0 : i32
    %c0_i32_0 = arith.constant 0 : i32
    %c0_i32_1 = arith.constant 0 : i32
    return %c0_i32, %c0_i32_0 : i32, i32
  }
  func.func @transform_2(%arg0: i32) -> (i32, i32) {
    %c0_i32 = arith.constant 0 : i32
    %c0_i32_0 = arith.constant 0 : i32
    %c0_i32_1 = arith.constant 0 : i32
    return %c0_i32, %c0_i32_0 : i32, i32
  }
  func.func @transform_3(%arg0: i32) -> (i32, i32, i32) {
    %c0_i32 = arith.constant 0 : i32
    %c0_i32_0 = arith.constant 0 : i32
    %c0_i32_1 = arith.constant 0 : i32
    return %arg0, %c0_i32, %c0_i32_0 : i32, i32, i32
  }
}

</mosaic_0001>

<llo_original>
// kernel: tpu_custom_call.1
$region0: #{tpu_custom_call.1}
  #allocation0 [shape = 'u32[]', space=smem, size = 0x4, offset = 0x4, fixed_abs, tag = 'smem constant byte address 0x4 - core index']
  #allocation1 [shape = 'u32[144,128]{1,0:T(1,128)}', space=vmem, size = 0x12000, scoped, tag = 'internal scratch']
  %s0 = inlined_call_operand.hbm [shape: s32[2,1,8], index: 0, kind: input, shape index: {}]
  %s1 = inlined_call_operand.hbm [shape: f32[21,32], index: 1, kind: input, shape index: {}]
  %s2 = inlined_call_operand.hbm [shape: f32[8,32], index: 2, kind: input, shape index: {}]
  %s3 = inlined_call_operand.hbm [shape: f32[2,8,32], index: 3, kind: output, shape index: {}]
  %s4 = sld [smem:[#allocation0]]
  $region57: #{tpu_custom_call.1} parent=0
    _
  %s6 = ssub.s32 1, %s4
  %s7 = scalar_select 0, %s6, %s4
  $region1: #{tpu_custom_call.1} parent=0
    #allocation2 [shape = 'u8[1024]{0}', space=vmem, size = 0x400, scoped, tag = 'input window, operand 0']
    #allocation3 [shape = 's32[2]{0}', space=sflag, size = 0x8, scoped, tag = 'scoped memory for tpu_custom_call.1']
    #allocation4 [shape = 's32[2]{0}', space=sflag, size = 0x8, scoped, tag = 'scoped memory for tpu_custom_call.1']
    #allocation5 [shape = 'u8[12288]{0}', space=vmem, size = 0x3000, scoped, tag = 'input window, operand 1, single buffered']
    #allocation6 [shape = 's32[1]{0}', space=sflag, size = 0x4, scoped, tag = 'scoped memory for tpu_custom_call.1']
    #allocation7 [shape = 'u8[4096]{0}', space=vmem, size = 0x1000, scoped, tag = 'input window, operand 2, single buffered']
    #allocation8 [shape = 'u8[8192]{0}', space=vmem, size = 0x2000, scoped, tag = 'output window, operand 0']
    %8 = vsyncpa [#allocation3], 0
    %s9 = scalar_lea.sflag [#allocation3], 1
    %10 = vsyncpa %s9, 0
    %11 = vsyncpa [#allocation6], 0
    %12 = vsyncpa [#allocation4], 0
    %s13 = scalar_lea.sflag [#allocation4], 1
    %14 = vsyncpa %s13, 0
    loop: start=0, step=1, limit=4
    $region2: #{tpu_custom_call.1} parent=1 // loop_pre_header
      _
    $region3: #{tpu_custom_call.1} parent=1 // loop_header
      %s16 = sphi 0, %s20
      %p17 = scmp.ge.s32.totalorder %s16, 4
      %s26 = sphi 0, %s28
      %s29 = sphi 0, %s26
      %s30 = sphi 0, %s29
      %s46 = sphi 0, %s30
      %s50 = sphi 0, %s50
      %s52 = sphi 0, %s50
      %s53 = sphi 0, %s52
      %s67 = sphi 0, %s53
      %s71 = sphi 0, %s71
      %s73 = sphi 0, %s71
      %s74 = sphi 0, %s73
      %s88 = sphi 0, %s74
      %s94 = sphi 0, %s96
      %s97 = sphi 0, %s94
      %s98 = sphi 0, %s97
      %s114 = sphi 0, %s98
    $region4: #{tpu_custom_call.1} parent=1 // loop_header_branch
      %19 = sbr.rel (%p17) target = $region8
    $region5: #{tpu_custom_call.1} parent=1 // loop_body
      %s21 = ssub.s32 %s16, 1
      %s22 = ssub.s32 %s16, 2
      %s23 = sadd.s32 %s16, 1
      %s24 = ssub.s32 %s16, %s23
      %p25 = scmp.eq.s32.totalorder %s24, 0
      %s27 = sadd.s32 %s26, 1
      %s28 = scalar_select %p25, %s26, %s27
      %p31 = pneg %p25
      %p32 = scmp.eq.s32.totalorder %s16, 1
      %p33 = por %p31, %p32
      %p34 = scmp.ne.s32.totalorder %s26, %s29
      %p35 = scmp.eq.s32.totalorder %s16, 0
      %p36 = por %p34, %p35
      %p37 = scmp.ne.s32.totalorder %s26, %s29
      %p38 = scmp.eq.s32.totalorder %s21, 1
      %p39 = por %p37, %p38
      %p40 = scmp.ne.s32.totalorder %s29, %s30
      %p41 = scmp.eq.s32.totalorder %s21, 0
      %p42 = por %p40, %p41
      %p43 = scmp.ne.s32.totalorder %s29, %s30
      %p44 = scmp.eq.s32.totalorder %s22, 1
      %p45 = por %p43, %p44
      %p47 = scmp.ne.s32.totalorder %s30, %s46
      %p48 = scmp.eq.s32.totalorder %s22, 0
      %p49 = por %p47, %p48
      %s51 = sadd.s32 %s50, 1
      %p54 = scmp.eq.s32.totalorder %s16, 1
      %p55 = scmp.ne.s32.totalorder %s50, %s52
      %p56 = scmp.eq.s32.totalorder %s16, 0
      %p57 = por %p55, %p56
      %p58 = scmp.ne.s32.totalorder %s50, %s52
      %p59 = scmp.eq.s32.totalorder %s21, 1
      %p60 = por %p58, %p59
      %p61 = scmp.ne.s32.totalorder %s52, %s53
      %p62 = scmp.eq.s32.totalorder %s21, 0
      %p63 = por %p61, %p62
      %p64 = scmp.ne.s32.totalorder %s52, %s53
      %p65 = scmp.eq.s32.totalorder %s22, 1
      %p66 = por %p64, %p65
      %p68 = scmp.ne.s32.totalorder %s53, %s67
      %p69 = scmp.eq.s32.totalorder %s22, 0
      %p70 = por %p68, %p69
      %s72 = sadd.s32 %s71, 1
      %p75 = scmp.eq.s32.totalorder %s16, 1
      %p76 = scmp.ne.s32.totalorder %s71, %s73
      %p77 = scmp.eq.s32.totalorder %s16, 0
      %p78 = por %p76, %p77
      %p79 = scmp.ne.s32.totalorder %s71, %s73
      %p80 = scmp.eq.s32.totalorder %s21, 1
      %p81 = por %p79, %p80
      %p82 = scmp.ne.s32.totalorder %s73, %s74
      %p83 = scmp.eq.s32.totalorder %s21, 0
      %p84 = por %p82, %p83
      %p85 = scmp.ne.s32.totalorder %s73, %s74
      %p86 = scmp.eq.s32.totalorder %s22, 1
      %p87 = por %p85, %p86
      %p89 = scmp.ne.s32.totalorder %s74, %s88
      %p90 = scmp.eq.s32.totalorder %s22, 0
      %p91 = por %p89, %p90
      %s92 = ssub.s32 %s16, %s23
      %p93 = scmp.eq.s32.totalorder %s92, 0
      %s95 = sadd.s32 %s94, 1
      %s96 = scalar_select %p93, %s94, %s95
      %p99 = pneg %p93
      %p100 = scmp.eq.s32.totalorder %s16, 1
      %p101 = por %p99, %p100
      %p102 = scmp.ne.s32.totalorder %s94, %s97
      %p103 = scmp.eq.s32.totalorder %s16, 0
      %p104 = por %p102, %p103
      %p105 = scmp.ne.s32.totalorder %s94, %s97
      %p106 = scmp.eq.s32.totalorder %s21, 1
      %p107 = por %p105, %p106
      %p108 = scmp.ne.s32.totalorder %s97, %s98
      %p109 = scmp.eq.s32.totalorder %s21, 0
      %p110 = por %p108, %p109
      %p111 = scmp.ne.s32.totalorder %s97, %s98
      %p112 = scmp.eq.s32.totalorder %s22, 1
      %p113 = por %p111, %p112
      %p115 = scmp.ne.s32.totalorder %s98, %s114
      %p116 = scmp.eq.s32.totalorder %s22, 0
      %p117 = por %p115, %p116
      %p118 = scmp.le.s32.totalorder 1, %s16
      %p119 = scmp.lt.s32.totalorder %s16, 3
      %p120 = pnand %p118, %p119
      %p121 = pneg %p120
      // Predicated region
      $region9: #{tpu_custom_call.1} parent=5 // pred_check
        _
      $region10: #{tpu_custom_call.1} parent=5 // pred_check_branch
        %123 = sbr.rel (%p120) target = $region12
      $region11: #{tpu_custom_call.1} parent=5 // pred_region
        %s124 = ssub.s32 %s16, 1
        // Predicated region
        $region13: #{tpu_custom_call.1} parent=11 // pred_check
          %p125 = pneg %p63
        $region14: #{tpu_custom_call.1} parent=11 // pred_check_branch
          %127 = sbr.rel (%p125) target = $region16
        $region15: #{tpu_custom_call.1} parent=11 // pred_region
          %s129 = ssub.s32 384, 384
          %130 = vsyncadd [#allocation6], %s129
          %s131 = sshll.u32 [#allocation5], 4
          %s132 = int_to_ptr.vmem [resolvable:$true] %s131
          %137 = dma.hbm_to_vmem [thread:$0]  %s1, 384, %s132, [#allocation6], 128, 128, 8
        $region16: #{tpu_custom_call.1} parent=11 // pred_fallthru
          _
        // Predicated region
        $region17: #{tpu_custom_call.1} parent=11 // pred_check
          %p138 = pneg %p84
        $region18: #{tpu_custom_call.1} parent=11 // pred_check_branch
          %140 = sbr.rel (%p138) target = $region20
        $region19: #{tpu_custom_call.1} parent=11 // pred_region
          %s142 = ssub.s32 128, 128
          %143 = vsyncadd [#allocation6], %s142
          %s145 = sshll.u32 [#allocation7], 4
          %s146 = int_to_ptr.vmem [resolvable:$true] %s145
          %148 = dma.hbm_to_vmem [thread:$0]  %s2, 128, %s146, [#allocation6]
        $region20: #{tpu_custom_call.1} parent=11 // pred_fallthru
          _
      $region12: #{tpu_custom_call.1} parent=5 // pred_fallthru
        _
      %p149 = scmp.lt.s32.totalorder %s16, 2
      // Predicated region
      $region21: #{tpu_custom_call.1} parent=5 // pred_check
        %p150 = pneg %p149
      $region22: #{tpu_custom_call.1} parent=5 // pred_check_branch
        %152 = sbr.rel (%p150) target = $region24
      $region23: #{tpu_custom_call.1} parent=5 // pred_region
        // Predicated region
        $region25: #{tpu_custom_call.1} parent=23 // pred_check
          %p153 = pneg %p36
        $region26: #{tpu_custom_call.1} parent=23 // pred_check_branch
          %155 = sbr.rel (%p153) target = $region28
        $region27: #{tpu_custom_call.1} parent=23 // pred_region
          %s156 = sand.u32 %s26, 1
          %s157 = scalar_lea.sflag [#allocation3], %s156
          %s158 = sand.u32 %s26, 1
          %s159 = scalar_lea.vmem [#allocation2], %s158
          %s161 = ssub.s32 16, 16
          %162 = vsyncadd %s157, %s161
          %s163 = smul.addr %s16, 16
          %s164 = scalar_lea.hbm %s0, %s163
          %s166 = sshll.u32 %s159, 4
          %s167 = int_to_ptr.vmem [resolvable:$true] %s166
          %169 = dma.hbm_to_vmem [thread:$0]  %s164, 16, %s167, %s157
        $region28: #{tpu_custom_call.1} parent=23 // pred_fallthru
          _
      $region24: #{tpu_custom_call.1} parent=5 // pred_fallthru
        _
      %p170 = scmp.le.s32.totalorder 1, %s16
      %p171 = scmp.lt.s32.totalorder %s16, 3
      %p172 = pnand %p170, %p171
      %p173 = pneg %p172
      // Predicated region
      $region29: #{tpu_custom_call.1} parent=5 // pred_check
        _
      $region30: #{tpu_custom_call.1} parent=5 // pred_check_branch
        %175 = sbr.rel (%p172) target = $region32
      $region31: #{tpu_custom_call.1} parent=5 // pred_region
        %s176 = ssub.s32 %s16, 1
        %s177 = sand.u32 %s29, 1
        %s178 = scalar_lea.sflag [#allocation3], %s177
        %s179 = sand.u32 %s29, 1
        %s180 = scalar_lea.vmem [#allocation2], %s179
        // Predicated region
        $region33: #{tpu_custom_call.1} parent=31 // pred_check
          %p181 = pneg %p42
        $region34: #{tpu_custom_call.1} parent=31 // pred_check_branch
          %183 = sbr.rel (%p181) target = $region36
        $region35: #{tpu_custom_call.1} parent=31 // pred_region
          %184 = dma.done %s178, 16
        $region36: #{tpu_custom_call.1} parent=31 // pred_fallthru
          _
        // Predicated region
        $region37: #{tpu_custom_call.1} parent=31 // pred_check
          %p185 = pneg %p63
        $region38: #{tpu_custom_call.1} parent=31 // pred_check_branch
          %187 = sbr.rel (%p185) target = $region40
        $region39: #{tpu_custom_call.1} parent=31 // pred_region
          %188 = dma.done [#allocation6], 384
        $region40: #{tpu_custom_call.1} parent=31 // pred_fallthru
          _
        // Predicated region
        $region41: #{tpu_custom_call.1} parent=31 // pred_check
          %p189 = pneg %p84
        $region42: #{tpu_custom_call.1} parent=31 // pred_check_branch
          %191 = sbr.rel (%p189) target = $region44
        $region43: #{tpu_custom_call.1} parent=31 // pred_region
          %192 = dma.done [#allocation6], 128
        $region44: #{tpu_custom_call.1} parent=31 // pred_fallthru
          _
        %s193 = sand.u32 %s29, 1
        %s194 = scalar_lea.sflag [#allocation3], %s193
        %s195 = sand.u32 %s29, 1
        %s196 = scalar_lea.vmem [#allocation2], %s195
        %p197 = pneg %p42
        %p198 = pneg %p39
        %p199 = pneg %p63
        %p200 = pneg %p60
        %p201 = pneg %p84
        %p202 = pneg %p81
        %p203 = pneg %p110
        %p204 = pneg %p107
        %s205 = sand.u32 %s97, 1
        %s206 = scalar_lea.sflag [#allocation4], %s205
        %s207 = sand.u32 %s97, 1
        %s208 = smul.addr %s207, 8
        %s209 = scalar_lea.vmem [#allocation8], %s208
        %v210 = vld [vmem:[%s180] sm:$0x1]
        %v211 = vlaneseq
        %v212 = vshrl.u32 %v211, 7
        %v213 = vadd.s32 %v212, 8
        %v214 = vadd.s32 %v212, 16
        %v215 = vlaneseq
        %v216 = vshrl.u32 %v215, 7
        %v217 = vsub.s32 0, %v216
        %v218 = vrot.slane %v210, %v217
        %vm219 = vcmp.eq.s32.totalorder %v212, %v218
        %vm220 = vcmp.eq.s32.totalorder %v213, %v218
        %vm221 = vcmp.eq.s32.totalorder %v214, %v218
        %v222 = vsel %vm219, 1, 0
        %v223 = vsel %vm220, 1, 0
        %v224 = vsel %vm221, 1, 0
        %v225 = vcvt.s32.f32 %v222
        %v226 = vcvt.s32.f32 %v223
        %v227 = vcvt.s32.f32 %v224
        %v228 = vld [vmem:[#allocation5] sm:$0xff]
        %v229 = vld [vmem:[#allocation5 + $0x8] sm:$0xff]
        %v230 = vld [vmem:[#allocation5 + $0x10] sm:$0x1f]
        %231 = vxpose.xlu0.b32.start [1/16] %v225, 128
        %232 = vxpose.xlu0.b32.cont [2/16] %v226, 128
        %233 = vxpose.xlu0.b32.cont [3/16] %v227, 128
        %234 = vxpose.xlu0.b32.cont [4/16] 0.0, 128
        %235 = vxpose.xlu0.b32.cont [5/16] 0.0, 128
        %236 = vxpose.xlu0.b32.cont [6/16] 0.0, 128
        %237 = vxpose.xlu0.b32.cont [7/16] 0.0, 128
        %238 = vxpose.xlu0.b32.cont [8/16] 0.0, 128
        %239 = vxpose.xlu0.b32.cont [9/16] 0.0, 128
        %240 = vxpose.xlu0.b32.cont [10/16] 0.0, 128
        %241 = vxpose.xlu0.b32.cont [11/16] 0.0, 128
        %242 = vxpose.xlu0.b32.cont [12/16] 0.0, 128
        %243 = vxpose.xlu0.b32.cont [13/16] 0.0, 128
        %244 = vxpose.xlu0.b32.cont [14/16] 0.0, 128
        %245 = vxpose.xlu0.b32.cont [15/16] 0.0, 128
        %246 = vxpose.xlu0.b32.end [16/16] 0.0, 128
        %v247 = vpop.trf.xlu0
        %v248 = vpop.trf.xlu0
        %v249 = vpop.trf.xlu0
        %v250 = vpop.trf.xlu0
        %v251 = vpop.trf.xlu0
        %v252 = vpop.trf.xlu0
        %v253 = vpop.trf.xlu0
        %v254 = vpop.trf.xlu0
        %v255 = vpop.trf.xlu0
        %v256 = vpop.trf.xlu0
        %v257 = vpop.trf.xlu0
        %v258 = vpop.trf.xlu0
        %v259 = vpop.trf.xlu0
        %v260 = vpop.trf.xlu0
        %v261 = vpop.trf.xlu0
        %v262 = vpop.trf.xlu0
        %vm263 = vcmask 171008
        %v265 = vsel %vm263, %v247, 0
        %vm267 = vcmask 1044480
        %v269 = vsel %vm267, %v230, 0
        %271 = vmatprep.subr.mxu0 0.0
        %272 = vmatpush1.msra.mxu0 %v228
        %273 = vmatprep.subr.mxu0 0.0
        %274 = vmatpush1.msra.mxu0 %v229
        %275 = vmatprep.subr.mxu0 0.0
        %276 = vmatpush1.msra.mxu0 %v269
        %277 = vmatprep.subr.mxu0 0.0
        %278 = vmatpush1.msra.mxu0 0.0
        %279 = vmatprep.subr.mxu0 0.0
        %280 = vmatpush1.msra.mxu0 0.0
        %281 = vmatprep.subr.mxu0 0.0
        %282 = vmatpush1.msra.mxu0 0.0
        %283 = vmatprep.subr.mxu0 0.0
        %284 = vmatpush1.msra.mxu0 0.0
        %285 = vmatprep.subr.mxu0 0.0
        %286 = vmatpush1.msra.mxu0 0.0
        %287 = vmatprep.subr.mxu0 0.0
        %288 = vmatpush1.msra.mxu0 0.0
        %289 = vmatprep.subr.mxu0 0.0
        %290 = vmatpush1.msra.mxu0 0.0
        %291 = vmatprep.subr.mxu0 0.0
        %292 = vmatpush1.msra.mxu0 0.0
        %293 = vmatprep.subr.mxu0 0.0
        %294 = vmatpush1.msra.mxu0 0.0
        %295 = vmatprep.subr.mxu0 0.0
        %296 = vmatpush1.msra.mxu0 0.0
        %297 = vmatprep.subr.mxu0 0.0
        %298 = vmatpush1.msra.mxu0 0.0
        %299 = vmatprep.subr.mxu0 0.0
        %300 = vmatpush1.msra.mxu0 0.0
        %301 = vmatprep.subr.mxu0 0.0
        %302 = vmatpush1.msra.mxu0 0.0
        %303 = vmatprep.subr.mxu0 0.0
        %304 = vmatpush1.msra.mxu0 0.0
        %305 = vmatprep.subr.mxu0 0.0
        %306 = vmatpush1.msra.mxu0 0.0
        %307 = vmatprep.subr.mxu0 0.0
        %308 = vmatpush1.msra.mxu0 0.0
        %309 = vmatprep.subr.mxu0 0.0
        %310 = vmatpush1.msra.mxu0 0.0
        %311 = vmatprep.subr.mxu0 0.0
        %312 = vmatpush1.msra.mxu0 0.0
        %313 = vmatprep.subr.mxu0 0.0
        %314 = vmatpush1.msra.mxu0 0.0
        %315 = vmatprep.subr.mxu0 0.0
        %316 = vmatpush1.msra.mxu0 0.0
        %317 = vmatprep.subr.mxu0 0.0
        %318 = vmatpush1.msra.mxu0 0.0
        %319 = vmatprep.subr.mxu0 0.0
        %320 = vmatpush1.msra.mxu0 0.0
        %321 = vmatprep.subr.mxu0 0.0
        %322 = vmatpush1.msra.mxu0 0.0
        %323 = vmatprep.subr.mxu0 0.0
        %324 = vmatpush1.msra.mxu0 0.0
        %325 = vmatprep.subr.mxu0 0.0
        %326 = vmatpush1.msra.mxu0 0.0
        %327 = vmatprep.subr.mxu0 0.0
        %328 = vmatpush1.msra.mxu0 0.0
        %329 = vmatprep.subr.mxu0 0.0
        %330 = vmatpush1.msra.mxu0 0.0
        %331 = vmatprep.subr.mxu0 0.0
        %332 = vmatpush1.msra.mxu0 0.0
        %333 = vmatprep.subr.mxu0 0.0
        %334 = vmatpush1.msra.mxu0 0.0
        %335 = vmatprep.mubr.f32.mxu0 0.0
        %336 = vmatmul.mubr.f32.gmra.mrb[0].mxu0 %v265
        %v337 = vpop.f32.mrb[0].mxu0
        %v338 = vadd.f32 0.0, %v337
        %v339 = vpop.f32.mrb[0].mxu0
        %340 = vdwg.mxu0
        %v341 = vmul.f32 %v338, 5.656854
        %v342 = vld [vmem:[#allocation7] sm:$0xff]
        %v343 = vadd.f32 %v341, %v342
        %vm344 = vcmask 261120
        %345 = vst.msk [vmem:[%s209] sm:$0xff] %vm344, %v343
        %s346 = sand.u32 %s97, 1
        %s347 = scalar_lea.sflag [#allocation4], %s346
        %s348 = sand.u32 %s97, 1
        %s349 = smul.addr %s348, 8
        %s350 = scalar_lea.vmem [#allocation8], %s349
        // Predicated region
        $region45: #{tpu_custom_call.1} parent=31 // pred_check
          %p351 = pneg %p107
        $region46: #{tpu_custom_call.1} parent=31 // pred_check_branch
          %353 = sbr.rel (%p351) target = $region48
        $region47: #{tpu_custom_call.1} parent=31 // pred_region
          %s355 = ssub.s32 128, 128
          %356 = vsyncadd %s347, %s355
          %s357 = smul.addr %s21, 128
          %s358 = scalar_lea.hbm %s3, %s357
          %s360 = sshll.u32 %s350, 4
          %s361 = int_to_ptr.vmem [resolvable:$true] %s360
          %363 = dma.vmem_to_hbm [thread:$0]  %s361, 128, %s358, %s347
        $region48: #{tpu_custom_call.1} parent=31 // pred_fallthru
          _
      $region32: #{tpu_custom_call.1} parent=5 // pred_fallthru
        _
      %p364 = scmp.le.s32.totalorder 2, %s16
      // Predicated region
      $region49: #{tpu_custom_call.1} parent=5 // pred_check
        %p365 = pneg %p364
      $region50: #{tpu_custom_call.1} parent=5 // pred_check_branch
        %367 = sbr.rel (%p365) target = $region52
      $region51: #{tpu_custom_call.1} parent=5 // pred_region
        %s368 = ssub.s32 %s16, 2
        // Predicated region
        $region53: #{tpu_custom_call.1} parent=51 // pred_check
          %p369 = pneg %p113
        $region54: #{tpu_custom_call.1} parent=51 // pred_check_branch
          %371 = sbr.rel (%p369) target = $region56
        $region55: #{tpu_custom_call.1} parent=51 // pred_region
          %s372 = sand.u32 %s98, 1
          %s373 = scalar_lea.sflag [#allocation4], %s372
          %s374 = sand.u32 %s98, 1
          %s375 = smul.addr %s374, 8
          %s376 = scalar_lea.vmem [#allocation8], %s375
          %377 = dma.done %s373, 128
        $region56: #{tpu_custom_call.1} parent=51 // pred_fallthru
          _
      $region52: #{tpu_custom_call.1} parent=5 // pred_fallthru
        _
    $region6: #{tpu_custom_call.1} parent=1 // loop_footer
      %s20 = sadd.s32 1, %s16
    $region7: #{tpu_custom_call.1} parent=1 // loop_footer_branch
      %15 = sbr.rel target = $region3
    $region8: #{tpu_custom_call.1} parent=1 // loop_exit
      _
    %378 = vsyncpa [#allocation3], 1
    %s379 = scalar_lea.sflag [#allocation3], 1
    %380 = vsyncpa %s379, 1
    %381 = vsyncpa [#allocation6], 1
    %382 = vsyncpa [#allocation4], 1
    %s383 = scalar_lea.sflag [#allocation4], 1
    %384 = vsyncpa %s383, 1

</llo_original>
